<compile_context>
chip_gen: v6e
topology: v6e:2x2x1
jax: 0.10.0
libtpu: 0.0.40
codegen_flags: <defaults>
</compile_context>

<pallas_src>
import jax
import jax.numpy as jnp
from jax.experimental import pallas as pl
from jax.experimental.pallas import tpu as pltpu


def _cdiv(a: int, b: int) -> int:
    return -(-a // b)


def _round_up(n: int, m: int) -> int:
    return ((n + m - 1) // m) * m


def _mlp_kernel(x_ref, w1_ref, b1_ref, w2_ref, b2_ref, o_ref, acc_ref):
    hk = pl.program_id(1)

    @pl.when(hk == 0)
    def _():
        acc_ref[...] = jnp.zeros_like(acc_ref)

    # Layer 1: MXU matmul (compute dtype operands, f32 accumulation), then
    # bias + ReLU in f32 on the VPU. x is cast in VMEM (no extra HBM pass).
    x = x_ref[...].astype(w1_ref.dtype)
    h = jnp.dot(x, w1_ref[...], preferred_element_type=jnp.float32,
                precision=jax.lax.Precision.HIGHEST)
    h = jnp.maximum(h + b1_ref[...], 0.0)

    # TODO(synk): nn.Dropout(p=0.5) is identity in eval mode; a training-mode
    # mask would use pltpu.prng_seed + pltpu.prng_random_bits here.

    # Layer 2: accumulate this H-chunk's partial product into the f32 scratch.
    acc_ref[...] += jnp.dot(h.astype(w2_ref.dtype), w2_ref[...],
                            preferred_element_type=jnp.float32,
                            precision=jax.lax.Precision.HIGHEST)

    @pl.when(hk == pl.num_programs(1) - 1)
    def _():
        o_ref[...] = (acc_ref[...] + b2_ref[...]).astype(o_ref.dtype)


def prepare_mlp_params(w1, b1, w2, b2, *, compute_dtype=jnp.bfloat16,
                       h_tile=1024):
    """One-time (model-init) parameter prep.

    Casts weights to the MXU compute dtype, keeps biases f32, and zero-pads
    the hidden dim only if it will be chunked (zero padding of the contracted
    H dim is exact: relu(0 + 0) @ 0 contributes nothing).
    """
    d_in, h = w1.shape
    d_out = w2.shape[1]
    c = compute_dtype

    if h <= h_tile:
        th, h_p = h, h
        w1p = jnp.asarray(w1, c)
        w2p = jnp.asarray(w2, c)
        b1p = jnp.asarray(b1, jnp.float32).reshape(1, h)
    else:
        th = h_tile
        h_p = _round_up(h, th)
        w1p = jnp.zeros((d_in, h_p), c).at[:, :h].set(w1.astype(c))
        w2p = jnp.zeros((h_p, d_out), c).at[:h, :].set(w2.astype(c))
        b1p = jnp.zeros((1, h_p), jnp.float32).at[:, :h].set(
            jnp.asarray(b1, jnp.float32).reshape(1, h))
    b2p = jnp.asarray(b2, jnp.float32).reshape(1, d_out)
    return dict(w1=w1p, b1=b1p, w2=w2p, b2=b2p, th=th)


def mlp_pallas_apply(x, params, *, block_b=512):
    """Apply the fused MLP kernel.  x: (B, D_in) -> (B, D_out) in x.dtype."""
    B, D_in = x.shape
    w1, b1, w2, b2 = params["w1"], params["b1"], params["w2"], params["b2"]
    TH = params["th"]
    H_p = w1.shape[1]
    D_out = w2.shape[1]
    out_dtype = x.dtype

    # Batch tile: big enough to amortize the ~0.35us/step grid overhead, but
    # capped at ceil(B/2) so the "parallel" axis has >=2 steps (v7x megacore).
    TB = max(8, min(block_b, _round_up(_cdiv(B, 2), 8)))
    nb = _cdiv(B, TB)          # ragged last tile handled by Pallas OOB masking
    nh = H_p // TH
    grid = (nb, nh)

    # VMEM working set (BlockSpec double-buffers streamed operands; that is
    # what we want for x / W chunks / out; the biases are negligible).
    bx = x.dtype.itemsize
    bc = w1.dtype.itemsize
    working_set = (
        2 * TB * D_in * bx                      # x tile (double-buffered)
        + 2 * D_in * TH * bc + 2 * TH * 4       # W1 chunk + b1 chunk
        + 2 * TH * D_out * bc + 2 * D_out * 4   # W2 chunk + b2
        + 2 * TB * D_out * bx                   # out tile (double-buffered)
        + TB * D_out * 4                        # f32 accumulator scratch
        + TB * TH * 4                           # live f32 hidden value
    )
    try:
        vmem_cap = int(getattr(pltpu.get_tpu_info(), "vmem_capacity_bytes",
                               64 << 20))
    except Exception:  # pragma: no cover - conservative fallback (v7x size)
        vmem_cap = 64 << 20
    vmem_limit = int(min(max(2 * working_set, 32 << 20), int(0.8 * vmem_cap)))

    cost = pl.CostEstimate(
        flops=2 * B * (D_in * H_p + H_p * D_out),
        transcendentals=0,
        bytes_accessed=int(x.size * bx + w1.size * bc + w2.size * bc
                           + (b1.size + b2.size) * 4 + B * D_out * bx),
    )

    return pl.pallas_call(
        _mlp_kernel,
        out_shape=jax.ShapeDtypeStruct((B, D_out), out_dtype),
        grid_spec=pltpu.PrefetchScalarGridSpec(
            num_scalar_prefetch=0,
            grid=grid,
            in_specs=[
                pl.BlockSpec((TB, D_in), lambda i, hk: (i, 0)),    # x tile
                pl.BlockSpec((D_in, TH), lambda i, hk: (0, hk)),   # W1 chunk
                pl.BlockSpec((1, TH), lambda i, hk: (0, hk)),      # b1 chunk
                pl.BlockSpec((TH, D_out), lambda i, hk: (hk, 0)),  # W2 chunk
                pl.BlockSpec((1, D_out), lambda i, hk: (0, 0)),    # b2 resident
            ],
            out_specs=pl.BlockSpec((TB, D_out), lambda i, hk: (i, 0)),
            scratch_shapes=[pltpu.VMEM((TB, D_out), jnp.float32)],
        ),
        compiler_params=pltpu.CompilerParams(
            dimension_semantics=("parallel", "arbitrary"),
            vmem_limit_bytes=vmem_limit,
        ),
        cost_estimate=cost,
    )(x, w1, b1, w2, b2)


def mlp_pallas(x, w1, b1, w2, b2, *, compute_dtype=jnp.bfloat16, block_b=512,
               h_tile=1024):
    """Convenience wrapper: prep params (normally done once at init) + apply."""
    params = prepare_mlp_params(w1, b1, w2, b2, compute_dtype=compute_dtype,
                                h_tile=h_tile)
    return mlp_pallas_apply(x, params, block_b=block_b)


def _torch_like_linear_init(key, fan_in, fan_out, dtype=jnp.float32):
    """Deterministic init mimicking nn.Linear's default U(-1/sqrt(fan_in), ...)."""
    kw, kb = jax.random.split(key)
    bound = 1.0 / jnp.sqrt(jnp.float32(fan_in))
    w = jax.random.uniform(kw, (fan_in, fan_out), dtype, -bound, bound)
    b = jax.random.uniform(kb, (1, fan_out), dtype, -bound, bound)
    return w, b


def _ref_mlp(x, w1, b1, w2, b2):
    """Pure-JAX reference (eval-mode nn.Sequential), true-f32 matmuls."""
    hi = jax.lax.Precision.HIGHEST
    h = jnp.maximum(jnp.dot(x, w1, precision=hi) + b1, 0.0)
    return jnp.dot(h, w2, precision=hi) + b2


if __name__ == "__main__":
    # Module config: MLP(in_dim=16, out_dim=8, hidden_dims=[32]) in eval mode.
    in_dim, hidden_dim, out_dim = 16, 32, 8
    batch = 8

    key = jax.random.PRNGKey(0)
    kx, k1, k2 = jax.random.split(key, 3)

    x = jax.random.normal(kx, (batch, in_dim), jnp.float32)
    w1, b1 = _torch_like_linear_init(k1, in_dim, hidden_dim)
    w2, b2 = _torch_like_linear_init(k2, hidden_dim, out_dim)

    ref = _ref_mlp(x, w1, b1, w2, b2)

    # f32-compute path: near-exact.
    out_f32 = mlp_pallas(x, w1, b1, w2, b2, compute_dtype=jnp.float32)
    jax.block_until_ready(out_f32)
    assert out_f32.shape == (batch, out_dim)
    assert jnp.allclose(out_f32, ref, atol=1e-4, rtol=1e-4), (
        "f32 path mismatch: max abs err = "
        f"{float(jnp.max(jnp.abs(out_f32 - ref)))}")

    # bf16-compute path (default, MXU-optimal): looser tolerance.
    out_bf16 = mlp_pallas(x, w1, b1, w2, b2, compute_dtype=jnp.bfloat16)
    jax.block_until_ready(out_bf16)
    assert out_bf16.shape == (batch, out_dim)
    assert jnp.allclose(out_bf16, ref, atol=5e-2, rtol=5e-2), (
        "bf16 path mismatch: max abs err = "
        f"{float(jnp.max(jnp.abs(out_bf16 - ref)))}")

    # Second config exercising hidden-dim chunking (hk grid axis), hidden-dim
    # zero padding, and a ragged last batch tile (B not a multiple of TB).
    B2, D_in2, H2, D_out2 = 20, 24, 2500, 16
    kx2, k3, k4 = jax.random.split(jax.random.PRNGKey(1), 3)
    x2 = jax.random.normal(kx2, (B2, D_in2), jnp.float32)
    w3, b3 = _torch_like_linear_init(k3, D_in2, H2)
    w4, b4 = _torch_like_linear_init(k4, H2, D_out2)
    ref2 = _ref_mlp(x2, w3, b3, w4, b4)

    out2 = mlp_pallas(x2, w3, b3, w4, b4, compute_dtype=jnp.float32,
                      h_tile=256)
    jax.block_until_ready(out2)
    assert out2.shape == (B2, D_out2)
    assert jnp.allclose(out2, ref2, atol=2e-3, rtol=2e-3), (
        "H-tiled f32 path mismatch: max abs err = "
        f"{float(jnp.max(jnp.abs(out2 - ref2)))}")

    print("KERNEL_OK")
</pallas_src>

<mosaic_0001>
module attributes {stable_mosaic.version = 11 : i64} {
  func.func @_mlp_kernel(%arg0: i32, %arg1: i32, %arg2: memref<8x16xf32, #tpu.memory_space<vmem>>, %arg3: memref<16x32xf32, #tpu.memory_space<vmem>>, %arg4: memref<1x32xf32, #tpu.memory_space<vmem>>, %arg5: memref<32x8xf32, #tpu.memory_space<vmem>>, %arg6: memref<1x8xf32, #tpu.memory_space<vmem>>, %arg7: memref<8x8xf32, #tpu.memory_space<vmem>>, %arg8: memref<8x8xf32, #tpu.memory_space<vmem>>) attributes {dimension_semantics = [#tpu.dimension_semantics<parallel>, #tpu.dimension_semantics<arbitrary>], iteration_bounds = array<i64: 1, 1>, scalar_prefetch = 0 : i64, scratch_operands = 1 : i64, tpu.core_type = #tpu.core_type<tc>, window_params = [{transform_indices = @transform_0, window_bounds = array<i64: 8, 16>}, {transform_indices = @transform_1, window_bounds = array<i64: 16, 32>}, {transform_indices = @transform_2, window_bounds = array<i64: 1, 32>}, {transform_indices = @transform_3, window_bounds = array<i64: 32, 8>}, {pipeline_mode = #tpu.pipeline_mode<synchronous>, transform_indices = @transform_4, window_bounds = array<i64: 1, 8>}, {transform_indices = @transform_5, window_bounds = array<i64: 8, 8>}]} {
    %c0_i32 = arith.constant 0 : i32
    %0 = arith.cmpi eq, %arg1, %c0_i32 : i32
    %1 = arith.extui %0 : i1 to i32
    %c0_i32_0 = arith.constant 0 : i32
    %2 = arith.cmpi ne, %1, %c0_i32_0 : i32
    scf.if %2 {
      %cst_16 = arith.constant 0.000000e+00 : f32
      %19 = vector.broadcast %cst_16 : f32 to vector<8x8xf32>
      %c0_17 = arith.constant 0 : index
      %c0_18 = arith.constant 0 : index
      %20 = vector.load %arg8[%c0_17, %c0_18] : memref<8x8xf32, #tpu.memory_space<vmem>>, vector<8x8xf32>
      tpu.vector_store %arg8[%c0_17, %c0_18], %19 {strides = array<i32>} : memref<8x8xf32, #tpu.memory_space<vmem>>, vector<8x8xf32>,
    } else {
    }
    %c0 = arith.constant 0 : index
    %c0_1 = arith.constant 0 : index
    %3 = vector.load %arg2[%c0, %c0_1] : memref<8x16xf32, #tpu.memory_space<vmem>>, vector<8x16xf32>
    %c0_2 = arith.constant 0 : index
    %c0_3 = arith.constant 0 : index
    %4 = vector.load %arg3[%c0_2, %c0_3] : memref<16x32xf32, #tpu.memory_space<vmem>>, vector<16x32xf32>
    %cst = arith.constant dense<0.000000e+00> : vector<8x32xf32>
    %5 = tpu.matmul %3, %4, %cst {dimension_numbers = #tpu.dot_dimension_numbers<[1], [0], [0], [1], [0, 0, 1, 1], [], []>, precision = #tpu.contract_precision<fp32>} : vector<8x16xf32>, vector<16x32xf32>, vector<8x32xf32> -> vector<8x32xf32>
    %c0_4 = arith.constant 0 : index
    %c0_5 = arith.constant 0 : index
    %6 = vector.load %arg4[%c0_4, %c0_5] : memref<1x32xf32, #tpu.memory_space<vmem>>, vector<1x32xf32>
    %7 = vector.broadcast %6 : vector<1x32xf32> to vector<8x32xf32>
    %8 = arith.addf %5, %7 : vector<8x32xf32>
    %cst_6 = arith.constant 0.000000e+00 : f32
    %9 = vector.broadcast %cst_6 : f32 to vector<8x32xf32>
    %10 = arith.maximumf %8, %9 : vector<8x32xf32>
    %c0_7 = arith.constant 0 : index
    %c0_8 = arith.constant 0 : index
    %11 = vector.load %arg8[%c0_7, %c0_8] : memref<8x8xf32, #tpu.memory_space<vmem>>, vector<8x8xf32>
    %c0_9 = arith.constant 0 : index
    %c0_10 = arith.constant 0 : index
    %12 = vector.load %arg5[%c0_9, %c0_10] : memref<32x8xf32, #tpu.memory_space<vmem>>, vector<32x8xf32>
    %cst_11 = arith.constant dense<0.000000e+00> : vector<8x8xf32>
    %13 = tpu.matmul %10, %12, %cst_11 {dimension_numbers = #tpu.dot_dimension_numbers<[1], [0], [0], [1], [0, 0, 1, 1], [], []>, precision = #tpu.contract_precision<fp32>} : vector<8x32xf32>, vector<32x8xf32>, vector<8x8xf32> -> vector<8x8xf32>
    %14 = arith.addf %11, %13 : vector<8x8xf32>
    %c0_12 = arith.constant 0 : index
    %c0_13 = arith.constant 0 : index
    %15 = vector.load %arg8[%c0_12, %c0_13] : memref<8x8xf32, #tpu.memory_space<vmem>>, vector<8x8xf32>
    tpu.vector_store %arg8[%c0_12, %c0_13], %14 {strides = array<i32>} : memref<8x8xf32, #tpu.memory_space<vmem>>, vector<8x8xf32>,
    %c0_i32_14 = arith.constant 0 : i32
    %16 = arith.cmpi eq, %arg1, %c0_i32_14 : i32
    %17 = arith.extui %16 : i1 to i32
    %c0_i32_15 = arith.constant 0 : i32
    %18 = arith.cmpi ne, %17, %c0_i32_15 : i32
    scf.if %18 {
      %c0_16 = arith.constant 0 : index
      %c0_17 = arith.constant 0 : index
      %19 = vector.load %arg8[%c0_16, %c0_17] : memref<8x8xf32, #tpu.memory_space<vmem>>, vector<8x8xf32>
      %c0_18 = arith.constant 0 : index
      %c0_19 = arith.constant 0 : index
      %20 = vector.load %arg6[%c0_18, %c0_19] : memref<1x8xf32, #tpu.memory_space<vmem>>, vector<1x8xf32>
      %21 = vector.broadcast %20 : vector<1x8xf32> to vector<8x8xf32>
      %22 = arith.addf %19, %21 : vector<8x8xf32>
      %c0_20 = arith.constant 0 : index
      %c0_21 = arith.constant 0 : index
      %23 = vector.load %arg7[%c0_20, %c0_21] : memref<8x8xf32, #tpu.memory_space<vmem>>, vector<8x8xf32>
      tpu.vector_store %arg7[%c0_20, %c0_21], %22 {strides = array<i32>} : memref<8x8xf32, #tpu.memory_space<vmem>>, vector<8x8xf32>,
    } else {
    }
    return
  }
  func.func @transform_0(%arg0: i32, %arg1: i32) -> (i32, i32) {
    %c0_i32 = arith.constant 0 : i32
    %c0_i32_0 = arith.constant 0 : i32
    return %arg0, %c0_i32 : i32, i32
  }
  func.func @transform_1(%arg0: i32, %arg1: i32) -> (i32, i32) {
    %c0_i32 = arith.constant 0 : i32
    %c0_i32_0 = arith.constant 0 : i32
    return %c0_i32, %arg1 : i32, i32
  }
  func.func @transform_2(%arg0: i32, %arg1: i32) -> (i32, i32) {
    %c0_i32 = arith.constant 0 : i32
    %c0_i32_0 = arith.constant 0 : i32
    return %c0_i32, %arg1 : i32, i32
  }
  func.func @transform_3(%arg0: i32, %arg1: i32) -> (i32, i32) {
    %c0_i32 = arith.constant 0 : i32
    %c0_i32_0 = arith.constant 0 : i32
    return %arg1, %c0_i32 : i32, i32
  }
  func.func @transform_4(%arg0: i32, %arg1: i32) -> (i32, i32) {
    %c0_i32 = arith.constant 0 : i32
    %c0_i32_0 = arith.constant 0 : i32
    %c0_i32_1 = arith.constant 0 : i32
    return %c0_i32, %c0_i32_0 : i32, i32
  }
  func.func @transform_5(%arg0: i32, %arg1: i32) -> (i32, i32) {
    %c0_i32 = arith.constant 0 : i32
    %c0_i32_0 = arith.constant 0 : i32
    return %arg0, %c0_i32 : i32, i32
  }
}

</mosaic_0001>

<llo_original>
// kernel: tpu_custom_call.1
$region0: #{tpu_custom_call.1}
  #allocation0 [shape = 'u32[]', space=smem, size = 0x4, offset = 0x4, fixed_abs, tag = 'smem constant byte address 0x4 - core index']
  #allocation1 [shape = 'u32[144,128]{1,0:T(1,128)}', space=vmem, size = 0x12000, scoped, tag = 'internal scratch']
  #allocation2 [shape = 'f32[8,8]{1,0:T(8,128)}', space=vmem, size = 0x1000, scoped, tag = 'scratch operand']
  %s0 = inlined_call_operand.vmem [shape: f32[8,16], index: 0, kind: input, shape index: {}]
  %s1 = inlined_call_operand.vmem [shape: f32[16,32], index: 1, kind: input, shape index: {}]
  %s2 = inlined_call_operand.vmem [shape: f32[1,32], index: 2, kind: input, shape index: {}]
  %s3 = inlined_call_operand.vmem [shape: f32[32,8], index: 3, kind: input, shape index: {}]
  %s4 = inlined_call_operand.vmem [shape: f32[1,8], index: 4, kind: input, shape index: {}]
  %s5 = inlined_call_operand.hbm [shape: f32[8,8], index: 5, kind: output, shape index: {}]
  %s6 = sld [smem:[#allocation0]]
  $region38: #{tpu_custom_call.1} parent=0
    _
  %s8 = ssub.s32 1, %s6
  %s9 = scalar_select 0, %s8, %s6
  $region1: #{tpu_custom_call.1} parent=0
    #allocation3 [shape = 'u8[4096]{0}', space=vmem, size = 0x1000, scoped, tag = 'output window, operand 0, single buffered']
    #allocation4 [shape = 's32[1]{0}', space=sflag, size = 0x4, scoped, tag = 'scoped memory for tpu_custom_call.1']
    %10 = vsyncpa [#allocation4], 0
    // Predicated region
    $region2: #{tpu_custom_call.1} parent=1 // pred_check
      _
    $region3: #{tpu_custom_call.1} parent=1 // pred_check_branch
      %12 = sbr.rel (0) target = $region5
    $region4: #{tpu_custom_call.1} parent=1 // pred_region
      _
    $region5: #{tpu_custom_call.1} parent=1 // pred_fallthru
      _
    // Predicated region
    $region6: #{tpu_custom_call.1} parent=1 // pred_check
      _
    $region7: #{tpu_custom_call.1} parent=1 // pred_check_branch
      %14 = sbr.rel (0) target = $region9
    $region8: #{tpu_custom_call.1} parent=1 // pred_region
      _
    $region9: #{tpu_custom_call.1} parent=1 // pred_fallthru
      _
    // Predicated region
    $region10: #{tpu_custom_call.1} parent=1 // pred_check
      _
    $region11: #{tpu_custom_call.1} parent=1 // pred_check_branch
      %16 = sbr.rel (0) target = $region13
    $region12: #{tpu_custom_call.1} parent=1 // pred_region
      _
    $region13: #{tpu_custom_call.1} parent=1 // pred_fallthru
      _
    // Predicated region
    $region14: #{tpu_custom_call.1} parent=1 // pred_check
      _
    $region15: #{tpu_custom_call.1} parent=1 // pred_check_branch
      %18 = sbr.rel (0) target = $region17
    $region16: #{tpu_custom_call.1} parent=1 // pred_region
      _
    $region17: #{tpu_custom_call.1} parent=1 // pred_fallthru
      _
    // Predicated region
    $region18: #{tpu_custom_call.1} parent=1 // pred_check
      _
    $region19: #{tpu_custom_call.1} parent=1 // pred_check_branch
      %20 = sbr.rel (0) target = $region21
    $region20: #{tpu_custom_call.1} parent=1 // pred_region
      _
    $region21: #{tpu_custom_call.1} parent=1 // pred_fallthru
      _
    %p21 = scmp.eq.s32.totalorder 0, 0
    // Predicated region
    $region22: #{tpu_custom_call.1} parent=1 // pred_check
      %p22 = pneg %p21
    $region23: #{tpu_custom_call.1} parent=1 // pred_check_branch
      %24 = sbr.rel (%p22) target = $region25
    $region24: #{tpu_custom_call.1} parent=1 // pred_region
      %vm25 = vcmask 64512
      %26 = vst.msk [vmem:[#allocation2] sm:$0xff] %vm25, 0.0
    $region25: #{tpu_custom_call.1} parent=1 // pred_fallthru
      _
    %v27 = vld [vmem:[%s0] sm:$0xff]
    %v28 = vld [vmem:[%s1] sm:$0xff]
    %v29 = vld [vmem:[%s1 + $0x8] sm:$0xff]
    %v30 = vld [vmem:[%s2] sm:$0x1]
    %v32 = vlaneseq
    %v33 = vshrl.u32 %v32, 7
    %v34 = vsub.s32 0, %v33
    %v35 = vrot.slane %v30, %v34
    %vm37 = vcmask 130048
    %v39 = vsel %vm37, %v27, 0
    %41 = vmatprep.subr.mxu0 0.0
    %42 = vmatpush1.msra.mxu0 0.0
    %43 = vmatprep.subr.mxu0 0.0
    %44 = vmatpush1.msra.mxu0 0.0
    %45 = vmatprep.subr.mxu0 0.0
    %46 = vmatpush1.msra.mxu0 0.0
    %47 = vmatprep.subr.mxu0 0.0
    %48 = vmatpush1.msra.mxu0 0.0
    %49 = vmatprep.subr.mxu0 0.0
    %50 = vmatpush1.msra.mxu0 0.0
    %51 = vmatprep.subr.mxu0 0.0
    %52 = vmatpush1.msra.mxu0 0.0
    %53 = vmatprep.subr.mxu0 0.0
    %54 = vmatpush1.msra.mxu0 0.0
    %55 = vmatprep.subr.mxu0 0.0
    %56 = vmatpush1.msra.mxu0 0.0
    %57 = vmatprep.subr.mxu0 0.0
    %58 = vmatpush1.msra.mxu0 0.0
    %59 = vmatprep.subr.mxu0 0.0
    %60 = vmatpush1.msra.mxu0 0.0
    %61 = vmatprep.subr.mxu0 0.0
    %62 = vmatpush1.msra.mxu0 0.0
    %63 = vmatprep.subr.mxu0 0.0
    %64 = vmatpush1.msra.mxu0 0.0
    %65 = vmatprep.subr.mxu0 0.0
    %66 = vmatpush1.msra.mxu0 0.0
    %67 = vmatprep.subr.mxu0 0.0
    %68 = vmatpush1.msra.mxu0 0.0
    %69 = vmatprep.subr.mxu0 0.0
    %v70 = vand.u32 %v29, 4294901760
    %71 = vmatpush1.msra.mxu0 %v70
    %72 = vmatprep.subr.mxu0 0.0
    %v73 = vand.u32 %v28, 4294901760
    %74 = vmatpush1.msra.mxu0 %v73
    %75 = vmatprep.subr.mxu0 0.0
    %76 = vmatpush2.msra.mxu0 0.0
    %77 = vmatprep.subr.mxu0 0.0
    %78 = vmatpush2.msra.mxu0 0.0
    %79 = vmatprep.subr.mxu0 0.0
    %80 = vmatpush2.msra.mxu0 0.0
    %81 = vmatprep.subr.mxu0 0.0
    %82 = vmatpush2.msra.mxu0 0.0
    %83 = vmatprep.subr.mxu0 0.0
    %84 = vmatpush2.msra.mxu0 0.0
    %85 = vmatprep.subr.mxu0 0.0
    %86 = vmatpush2.msra.mxu0 0.0
    %87 = vmatprep.subr.mxu0 0.0
    %88 = vmatpush2.msra.mxu0 0.0
    %89 = vmatprep.subr.mxu0 0.0
    %90 = vmatpush2.msra.mxu0 0.0
    %91 = vmatprep.subr.mxu0 0.0
    %92 = vmatpush2.msra.mxu0 0.0
    %93 = vmatprep.subr.mxu0 0.0
    %94 = vmatpush2.msra.mxu0 0.0
    %95 = vmatprep.subr.mxu0 0.0
    %96 = vmatpush2.msra.mxu0 0.0
    %97 = vmatprep.subr.mxu0 0.0
    %98 = vmatpush2.msra.mxu0 0.0
    %99 = vmatprep.subr.mxu0 0.0
    %100 = vmatpush2.msra.mxu0 0.0
    %101 = vmatprep.subr.mxu0 0.0
    %102 = vmatpush2.msra.mxu0 0.0
    %103 = vmatprep.subr.mxu0 0.0
    %104 = vmatpush2.msra.mxu0 0.0
    %105 = vmatprep.subr.mxu0 0.0
    %106 = vmatpush2.msra.mxu0 0.0
    %107 = vmatprep.mubr.f32.mxu0 0.0
    %v108 = vand.u32 %v39, 4294901760
    %v109 = vsub.f32 %v39, %v108
    %v110 = vand.u32 %v109, 4294901760
    %v111 = vsub.f32 %v109, %v110
    %v112 = vand.u32 %v111, 4294901760
    %113 = vmatmul.mubr.f32.gmra.mxu0 %v112
    %v114 = vpop.f32.mrf.mxu0
    %v115 = vadd.f32 %v35, %v114
    %v116 = vpop.f32.mrf.mxu0
    %117 = vdwg.mxu0
    %118 = vmatprep.subr.mxu0 0.0
    %119 = vmatpush1.msra.mxu0 0.0
    %120 = vmatprep.subr.mxu0 0.0
    %121 = vmatpush1.msra.mxu0 0.0
    %122 = vmatprep.subr.mxu0 0.0
    %123 = vmatpush1.msra.mxu0 0.0
    %124 = vmatprep.subr.mxu0 0.0
    %125 = vmatpush1.msra.mxu0 0.0
    %126 = vmatprep.subr.mxu0 0.0
    %127 = vmatpush1.msra.mxu0 0.0
    %128 = vmatprep.subr.mxu0 0.0
    %129 = vmatpush1.msra.mxu0 0.0
    %130 = vmatprep.subr.mxu0 0.0
    %131 = vmatpush1.msra.mxu0 0.0
    %132 = vmatprep.subr.mxu0 0.0
    %133 = vmatpush1.msra.mxu0 0.0
    %134 = vmatprep.subr.mxu0 0.0
    %135 = vmatpush1.msra.mxu0 0.0
    %136 = vmatprep.subr.mxu0 0.0
    %137 = vmatpush1.msra.mxu0 0.0
    %138 = vmatprep.subr.mxu0 0.0
    %139 = vmatpush1.msra.mxu0 0.0
    %140 = vmatprep.subr.mxu0 0.0
    %141 = vmatpush1.msra.mxu0 0.0
    %142 = vmatprep.subr.mxu0 0.0
    %143 = vmatpush1.msra.mxu0 0.0
    %144 = vmatprep.subr.mxu0 0.0
    %145 = vmatpush1.msra.mxu0 0.0
    %146 = vmatprep.subr.mxu0 0.0
    %v147 = vand.u32 %v29, 4294901760
    %v148 = vsub.f32 %v29, %v147
    %v149 = vand.u32 %v148, 4294901760
    %v150 = vsub.f32 %v148, %v149
    %v151 = vand.u32 %v150, 4294901760
    %152 = vmatpush1.msra.mxu0 %v151
    %153 = vmatprep.subr.mxu0 0.0
    %v154 = vand.u32 %v28, 4294901760
    %v155 = vsub.f32 %v28, %v154
    %v156 = vand.u32 %v155, 4294901760
    %v157 = vsub.f32 %v155, %v156
    %v158 = vand.u32 %v157, 4294901760
    %159 = vmatpush1.msra.mxu0 %v158
    %160 = vmatprep.subr.mxu0 0.0
    %161 = vmatpush2.msra.mxu0 0.0
    %162 = vmatprep.subr.mxu0 0.0
    %163 = vmatpush2.msra.mxu0 0.0
    %164 = vmatprep.subr.mxu0 0.0
    %165 = vmatpush2.msra.mxu0 0.0
    %166 = vmatprep.subr.mxu0 0.0
    %167 = vmatpush2.msra.mxu0 0.0
    %168 = vmatprep.subr.mxu0 0.0
    %169 = vmatpush2.msra.mxu0 0.0
    %170 = vmatprep.subr.mxu0 0.0
    %171 = vmatpush2.msra.mxu0 0.0
    %172 = vmatprep.subr.mxu0 0.0
    %173 = vmatpush2.msra.mxu0 0.0
    %174 = vmatprep.subr.mxu0 0.0
    %175 = vmatpush2.msra.mxu0 0.0
    %176 = vmatprep.subr.mxu0 0.0
    %177 = vmatpush2.msra.mxu0 0.0
    %178 = vmatprep.subr.mxu0 0.0
    %179 = vmatpush2.msra.mxu0 0.0
    %180 = vmatprep.subr.mxu0 0.0
    %181 = vmatpush2.msra.mxu0 0.0
    %182 = vmatprep.subr.mxu0 0.0
    %183 = vmatpush2.msra.mxu0 0.0
    %184 = vmatprep.subr.mxu0 0.0
    %185 = vmatpush2.msra.mxu0 0.0
    %186 = vmatprep.subr.mxu0 0.0
    %187 = vmatpush2.msra.mxu0 0.0
    %188 = vmatprep.subr.mxu0 0.0
    %189 = vmatpush2.msra.mxu0 0.0
    %190 = vmatprep.subr.mxu0 0.0
    %191 = vmatpush2.msra.mxu0 0.0
    %192 = vmatprep.mubr.f32.mxu0 0.0
    %v193 = vand.u32 %v39, 4294901760
    %194 = vmatmul.mubr.f32.gmra.mxu0 %v193
    %v195 = vpop.f32.mrf.mxu0
    %v196 = vadd.f32 %v115, %v195
    %v197 = vpop.f32.mrf.mxu0
    %198 = vdwg.mxu0
    %199 = vmatprep.subr.mxu0 0.0
    %200 = vmatpush1.msra.mxu0 0.0
    %201 = vmatprep.subr.mxu0 0.0
    %202 = vmatpush1.msra.mxu0 0.0
    %203 = vmatprep.subr.mxu0 0.0
    %204 = vmatpush1.msra.mxu0 0.0
    %205 = vmatprep.subr.mxu0 0.0
    %206 = vmatpush1.msra.mxu0 0.0
    %207 = vmatprep.subr.mxu0 0.0
    %208 = vmatpush1.msra.mxu0 0.0
    %209 = vmatprep.subr.mxu0 0.0
    %210 = vmatpush1.msra.mxu0 0.0
    %211 = vmatprep.subr.mxu0 0.0
    %212 = vmatpush1.msra.mxu0 0.0
    %213 = vmatprep.subr.mxu0 0.0
    %214 = vmatpush1.msra.mxu0 0.0
    %215 = vmatprep.subr.mxu0 0.0
    %216 = vmatpush1.msra.mxu0 0.0
    %217 = vmatprep.subr.mxu0 0.0
    %218 = vmatpush1.msra.mxu0 0.0
    %219 = vmatprep.subr.mxu0 0.0
    %220 = vmatpush1.msra.mxu0 0.0
    %221 = vmatprep.subr.mxu0 0.0
    %222 = vmatpush1.msra.mxu0 0.0
    %223 = vmatprep.subr.mxu0 0.0
    %224 = vmatpush1.msra.mxu0 0.0
    %225 = vmatprep.subr.mxu0 0.0
    %226 = vmatpush1.msra.mxu0 0.0
    %227 = vmatprep.subr.mxu0 0.0
    %v228 = vand.u32 %v29, 4294901760
    %v229 = vsub.f32 %v29, %v228
    %230 = vmatpush1.msra.mxu0 %v229
    %231 = vmatprep.subr.mxu0 0.0
    %v232 = vand.u32 %v28, 4294901760
    %v233 = vsub.f32 %v28, %v232
    %234 = vmatpush1.msra.mxu0 %v233
    %235 = vmatprep.subr.mxu0 0.0
    %236 = vmatpush2.msra.mxu0 0.0
    %237 = vmatprep.subr.mxu0 0.0
    %238 = vmatpush2.msra.mxu0 0.0
    %239 = vmatprep.subr.mxu0 0.0
    %240 = vmatpush2.msra.mxu0 0.0
    %241 = vmatprep.subr.mxu0 0.0
    %242 = vmatpush2.msra.mxu0 0.0
    %243 = vmatprep.subr.mxu0 0.0
    %244 = vmatpush2.msra.mxu0 0.0
    %245 = vmatprep.subr.mxu0 0.0
    %246 = vmatpush2.msra.mxu0 0.0
    %247 = vmatprep.subr.mxu0 0.0
    %248 = vmatpush2.msra.mxu0 0.0
    %249 = vmatprep.subr.mxu0 0.0
    %250 = vmatpush2.msra.mxu0 0.0
    %251 = vmatprep.subr.mxu0 0.0
    %252 = vmatpush2.msra.mxu0 0.0
    %253 = vmatprep.subr.mxu0 0.0
    %254 = vmatpush2.msra.mxu0 0.0
    %255 = vmatprep.subr.mxu0 0.0
    %256 = vmatpush2.msra.mxu0 0.0
    %257 = vmatprep.subr.mxu0 0.0
    %258 = vmatpush2.msra.mxu0 0.0
    %259 = vmatprep.subr.mxu0 0.0
    %260 = vmatpush2.msra.mxu0 0.0
    %261 = vmatprep.subr.mxu0 0.0
    %262 = vmatpush2.msra.mxu0 0.0
    %263 = vmatprep.subr.mxu0 0.0
    %264 = vmatpush2.msra.mxu0 0.0
    %265 = vmatprep.subr.mxu0 0.0
    %266 = vmatpush2.msra.mxu0 0.0
    %267 = vmatprep.mubr.f32.mxu0 0.0
    %v268 = vand.u32 %v39, 4294901760
    %v269 = vsub.f32 %v39, %v268
    %270 = vmatmul.mubr.f32.gmra.mxu0 %v269
    %v271 = vpop.f32.mrf.mxu0
    %v272 = vadd.f32 %v196, %v271
    %v273 = vpop.f32.mrf.mxu0
    %274 = vdwg.mxu0
    %275 = vmatprep.subr.mxu0 0.0
    %276 = vmatpush1.msra.mxu0 0.0
    %277 = vmatprep.subr.mxu0 0.0
    %278 = vmatpush1.msra.mxu0 0.0
    %279 = vmatprep.subr.mxu0 0.0
    %280 = vmatpush1.msra.mxu0 0.0
    %281 = vmatprep.subr.mxu0 0.0
    %282 = vmatpush1.msra.mxu0 0.0
    %283 = vmatprep.subr.mxu0 0.0
    %284 = vmatpush1.msra.mxu0 0.0
    %285 = vmatprep.subr.mxu0 0.0
    %286 = vmatpush1.msra.mxu0 0.0
    %287 = vmatprep.subr.mxu0 0.0
    %288 = vmatpush1.msra.mxu0 0.0
    %289 = vmatprep.subr.mxu0 0.0
    %290 = vmatpush1.msra.mxu0 0.0
    %291 = vmatprep.subr.mxu0 0.0
    %292 = vmatpush1.msra.mxu0 0.0
    %293 = vmatprep.subr.mxu0 0.0
    %294 = vmatpush1.msra.mxu0 0.0
    %295 = vmatprep.subr.mxu0 0.0
    %296 = vmatpush1.msra.mxu0 0.0
    %297 = vmatprep.subr.mxu0 0.0
    %298 = vmatpush1.msra.mxu0 0.0
    %299 = vmatprep.subr.mxu0 0.0
    %300 = vmatpush1.msra.mxu0 0.0
    %301 = vmatprep.subr.mxu0 0.0
    %302 = vmatpush1.msra.mxu0 0.0
    %303 = vmatprep.subr.mxu0 0.0
    %v304 = vand.u32 %v29, 4294901760
    %305 = vmatpush1.msra.mxu0 %v304
    %306 = vmatprep.subr.mxu0 0.0
    %v307 = vand.u32 %v28, 4294901760
    %308 = vmatpush1.msra.mxu0 %v307
    %309 = vmatprep.subr.mxu0 0.0
    %310 = vmatpush2.msra.mxu0 0.0
    %311 = vmatprep.subr.mxu0 0.0
    %312 = vmatpush2.msra.mxu0 0.0
    %313 = vmatprep.subr.mxu0 0.0
    %314 = vmatpush2.msra.mxu0 0.0
    %315 = vmatprep.subr.mxu0 0.0
    %316 = vmatpush2.msra.mxu0 0.0
    %317 = vmatprep.subr.mxu0 0.0
    %318 = vmatpush2.msra.mxu0 0.0
    %319 = vmatprep.subr.mxu0 0.0
    %320 = vmatpush2.msra.mxu0 0.0
    %321 = vmatprep.subr.mxu0 0.0
    %322 = vmatpush2.msra.mxu0 0.0
    %323 = vmatprep.subr.mxu0 0.0
    %324 = vmatpush2.msra.mxu0 0.0
    %325 = vmatprep.subr.mxu0 0.0
    %326 = vmatpush2.msra.mxu0 0.0
    %327 = vmatprep.subr.mxu0 0.0
    %328 = vmatpush2.msra.mxu0 0.0
    %329 = vmatprep.subr.mxu0 0.0
    %330 = vmatpush2.msra.mxu0 0.0
    %331 = vmatprep.subr.mxu0 0.0
    %332 = vmatpush2.msra.mxu0 0.0
    %333 = vmatprep.subr.mxu0 0.0
    %334 = vmatpush2.msra.mxu0 0.0
    %335 = vmatprep.subr.mxu0 0.0
    %336 = vmatpush2.msra.mxu0 0.0
    %337 = vmatprep.subr.mxu0 0.0
    %338 = vmatpush2.msra.mxu0 0.0
    %339 = vmatprep.subr.mxu0 0.0
    %340 = vmatpush2.msra.mxu0 0.0
    %341 = vmatprep.mubr.f32.mxu0 0.0
    %v342 = vand.u32 %v39, 4294901760
    %v343 = vsub.f32 %v39, %v342
    %v344 = vand.u32 %v343, 4294901760
    %345 = vmatmul.mubr.f32.gmra.mxu0 %v344
    %v346 = vpop.f32.mrf.mxu0
    %v347 = vadd.f32 %v272, %v346
    %v348 = vpop.f32.mrf.mxu0
    %349 = vdwg.mxu0
    %350 = vmatprep.subr.mxu0 0.0
    %351 = vmatpush1.msra.mxu0 0.0
    %352 = vmatprep.subr.mxu0 0.0
    %353 = vmatpush1.msra.mxu0 0.0
    %354 = vmatprep.subr.mxu0 0.0
    %355 = vmatpush1.msra.mxu0 0.0
    %356 = vmatprep.subr.mxu0 0.0
    %357 = vmatpush1.msra.mxu0 0.0
    %358 = vmatprep.subr.mxu0 0.0
    %359 = vmatpush1.msra.mxu0 0.0
    %360 = vmatprep.subr.mxu0 0.0
    %361 = vmatpush1.msra.mxu0 0.0
    %362 = vmatprep.subr.mxu0 0.0
    %363 = vmatpush1.msra.mxu0 0.0
    %364 = vmatprep.subr.mxu0 0.0
    %365 = vmatpush1.msra.mxu0 0.0
    %366 = vmatprep.subr.mxu0 0.0
    %367 = vmatpush1.msra.mxu0 0.0
    %368 = vmatprep.subr.mxu0 0.0
    %369 = vmatpush1.msra.mxu0 0.0
    %370 = vmatprep.subr.mxu0 0.0
    %371 = vmatpush1.msra.mxu0 0.0
    %372 = vmatprep.subr.mxu0 0.0
    %373 = vmatpush1.msra.mxu0 0.0
    %374 = vmatprep.subr.mxu0 0.0
    %375 = vmatpush1.msra.mxu0 0.0
    %376 = vmatprep.subr.mxu0 0.0
    %377 = vmatpush1.msra.mxu0 0.0
    %378 = vmatprep.subr.mxu0 0.0
    %v379 = vand.u32 %v29, 4294901760
    %v380 = vsub.f32 %v29, %v379
    %v381 = vand.u32 %v380, 4294901760
    %382 = vmatpush1.msra.mxu0 %v381
    %383 = vmatprep.subr.mxu0 0.0
    %v384 = vand.u32 %v28, 4294901760
    %v385 = vsub.f32 %v28, %v384
    %v386 = vand.u32 %v385, 4294901760
    %387 = vmatpush1.msra.mxu0 %v386
    %388 = vmatprep.subr.mxu0 0.0
    %389 = vmatpush2.msra.mxu0 0.0
    %390 = vmatprep.subr.mxu0 0.0
    %391 = vmatpush2.msra.mxu0 0.0
    %392 = vmatprep.subr.mxu0 0.0
    %393 = vmatpush2.msra.mxu0 0.0
    %394 = vmatprep.subr.mxu0 0.0
    %395 = vmatpush2.msra.mxu0 0.0
    %396 = vmatprep.subr.mxu0 0.0
    %397 = vmatpush2.msra.mxu0 0.0
    %398 = vmatprep.subr.mxu0 0.0
    %399 = vmatpush2.msra.mxu0 0.0
    %400 = vmatprep.subr.mxu0 0.0
    %401 = vmatpush2.msra.mxu0 0.0
    %402 = vmatprep.subr.mxu0 0.0
    %403 = vmatpush2.msra.mxu0 0.0
    %404 = vmatprep.subr.mxu0 0.0
    %405 = vmatpush2.msra.mxu0 0.0
    %406 = vmatprep.subr.mxu0 0.0
    %407 = vmatpush2.msra.mxu0 0.0
    %408 = vmatprep.subr.mxu0 0.0
    %409 = vmatpush2.msra.mxu0 0.0
    %410 = vmatprep.subr.mxu0 0.0
    %411 = vmatpush2.msra.mxu0 0.0
    %412 = vmatprep.subr.mxu0 0.0
    %413 = vmatpush2.msra.mxu0 0.0
    %414 = vmatprep.subr.mxu0 0.0
    %415 = vmatpush2.msra.mxu0 0.0
    %416 = vmatprep.subr.mxu0 0.0
    %417 = vmatpush2.msra.mxu0 0.0
    %418 = vmatprep.subr.mxu0 0.0
    %419 = vmatpush2.msra.mxu0 0.0
    %420 = vmatprep.mubr.f32.mxu0 0.0
    %v421 = vand.u32 %v39, 4294901760
    %422 = vmatmul.mubr.f32.gmra.mxu0 %v421
    %v423 = vpop.f32.mrf.mxu0
    %v424 = vadd.f32 %v347, %v423
    %v425 = vpop.f32.mrf.mxu0
    %426 = vdwg.mxu0
    %427 = vmatprep.subr.mxu0 0.0
    %428 = vmatpush1.msra.mxu0 0.0
    %429 = vmatprep.subr.mxu0 0.0
    %430 = vmatpush1.msra.mxu0 0.0
    %431 = vmatprep.subr.mxu0 0.0
    %432 = vmatpush1.msra.mxu0 0.0
    %433 = vmatprep.subr.mxu0 0.0
    %434 = vmatpush1.msra.mxu0 0.0
    %435 = vmatprep.subr.mxu0 0.0
    %436 = vmatpush1.msra.mxu0 0.0
    %437 = vmatprep.subr.mxu0 0.0
    %438 = vmatpush1.msra.mxu0 0.0
    %439 = vmatprep.subr.mxu0 0.0
    %440 = vmatpush1.msra.mxu0 0.0
    %441 = vmatprep.subr.mxu0 0.0
    %442 = vmatpush1.msra.mxu0 0.0
    %443 = vmatprep.subr.mxu0 0.0
    %444 = vmatpush1.msra.mxu0 0.0
    %445 = vmatprep.subr.mxu0 0.0
    %446 = vmatpush1.msra.mxu0 0.0
    %447 = vmatprep.subr.mxu0 0.0
    %448 = vmatpush1.msra.mxu0 0.0
    %449 = vmatprep.subr.mxu0 0.0
    %450 = vmatpush1.msra.mxu0 0.0
    %451 = vmatprep.subr.mxu0 0.0
    %452 = vmatpush1.msra.mxu0 0.0
    %453 = vmatprep.subr.mxu0 0.0
    %454 = vmatpush1.msra.mxu0 0.0
    %455 = vmatprep.subr.mxu0 0.0
    %v456 = vand.u32 %v29, 4294901760
    %457 = vmatpush1.msra.mxu0 %v456
    %458 = vmatprep.subr.mxu0 0.0
    %v459 = vand.u32 %v28, 4294901760
    %460 = vmatpush1.msra.mxu0 %v459
    %461 = vmatprep.subr.mxu0 0.0
    %462 = vmatpush2.msra.mxu0 0.0
    %463 = vmatprep.subr.mxu0 0.0
    %464 = vmatpush2.msra.mxu0 0.0
    %465 = vmatprep.subr.mxu0 0.0
    %466 = vmatpush2.msra.mxu0 0.0
    %467 = vmatprep.subr.mxu0 0.0
    %468 = vmatpush2.msra.mxu0 0.0
    %469 = vmatprep.subr.mxu0 0.0
    %470 = vmatpush2.msra.mxu0 0.0
    %471 = vmatprep.subr.mxu0 0.0
    %472 = vmatpush2.msra.mxu0 0.0
    %473 = vmatprep.subr.mxu0 0.0
    %474 = vmatpush2.msra.mxu0 0.0
    %475 = vmatprep.subr.mxu0 0.0
    %476 = vmatpush2.msra.mxu0 0.0
    %477 = vmatprep.subr.mxu0 0.0
    %478 = vmatpush2.msra.mxu0 0.0
    %479 = vmatprep.subr.mxu0 0.0
    %480 = vmatpush2.msra.mxu0 0.0
    %481 = vmatprep.subr.mxu0 0.0
    %482 = vmatpush2.msra.mxu0 0.0
    %483 = vmatprep.subr.mxu0 0.0
    %484 = vmatpush2.msra.mxu0 0.0
    %485 = vmatprep.subr.mxu0 0.0
    %486 = vmatpush2.msra.mxu0 0.0
    %487 = vmatprep.subr.mxu0 0.0
    %488 = vmatpush2.msra.mxu0 0.0
    %489 = vmatprep.subr.mxu0 0.0
    %490 = vmatpush2.msra.mxu0 0.0
    %491 = vmatprep.subr.mxu0 0.0
    %492 = vmatpush2.msra.mxu0 0.0
    %493 = vmatprep.mubr.f32.mxu0 0.0
    %v494 = vand.u32 %v39, 4294901760
    %495 = vmatmul.mubr.f32.gmra.mxu0 %v494
    %v496 = vpop.f32.mrf.mxu0
    %v497 = vadd.f32 %v424, %v496
    %v498 = vpop.f32.mrf.mxu0
    %499 = vdwg.mxu0
    %v500 = vmax.f32 %v497, 0.0
    %v501 = vld [vmem:[#allocation2] sm:$0xff]
    %v502 = vld [vmem:[%s3] sm:$0xff]
    %v503 = vld [vmem:[%s3 + $0x8] sm:$0xff]
    %v504 = vld [vmem:[%s3 + $0x10] sm:$0xff]
    %v505 = vld [vmem:[%s3 + $0x18] sm:$0xff]
    %vm506 = vcmask 261120
    %v508 = vsel %vm506, %v500, 0
    %510 = vmatprep.subr.mxu0 0.0
    %511 = vmatpush1.msra.mxu0 0.0
    %512 = vmatprep.subr.mxu0 0.0
    %513 = vmatpush1.msra.mxu0 0.0
    %514 = vmatprep.subr.mxu0 0.0
    %515 = vmatpush1.msra.mxu0 0.0
    %516 = vmatprep.subr.mxu0 0.0
    %517 = vmatpush1.msra.mxu0 0.0
    %518 = vmatprep.subr.mxu0 0.0
    %519 = vmatpush1.msra.mxu0 0.0
    %520 = vmatprep.subr.mxu0 0.0
    %521 = vmatpush1.msra.mxu0 0.0
    %522 = vmatprep.subr.mxu0 0.0
    %523 = vmatpush1.msra.mxu0 0.0
    %524 = vmatprep.subr.mxu0 0.0
    %525 = vmatpush1.msra.mxu0 0.0
    %526 = vmatprep.subr.mxu0 0.0
    %527 = vmatpush1.msra.mxu0 0.0
    %528 = vmatprep.subr.mxu0 0.0
    %529 = vmatpush1.msra.mxu0 0.0
    %530 = vmatprep.subr.mxu0 0.0
    %531 = vmatpush1.msra.mxu0 0.0
    %532 = vmatprep.subr.mxu0 0.0
    %533 = vmatpush1.msra.mxu0 0.0
    %534 = vmatprep.subr.mxu0 0.0
    %v535 = vand.u32 %v505, 4294901760
    %536 = vmatpush1.msra.mxu0 %v535
    %537 = vmatprep.subr.mxu0 0.0
    %v538 = vand.u32 %v504, 4294901760
    %539 = vmatpush1.msra.mxu0 %v538
    %540 = vmatprep.subr.mxu0 0.0
    %v541 = vand.u32 %v503, 4294901760
    %542 = vmatpush1.msra.mxu0 %v541
    %543 = vmatprep.subr.mxu0 0.0
    %v544 = vand.u32 %v502, 4294901760
    %545 = vmatpush1.msra.mxu0 %v544
    %546 = vmatprep.subr.mxu0 0.0
    %547 = vmatpush2.msra.mxu0 0.0
    %548 = vmatprep.subr.mxu0 0.0
    %549 = vmatpush2.msra.mxu0 0.0
    %550 = vmatprep.subr.mxu0 0.0
    %551 = vmatpush2.msra.mxu0 0.0
    %552 = vmatprep.subr.mxu0 0.0
    %553 = vmatpush2.msra.mxu0 0.0
    %554 = vmatprep.subr.mxu0 0.0
    %555 = vmatpush2.msra.mxu0 0.0
    %556 = vmatprep.subr.mxu0 0.0
    %557 = vmatpush2.msra.mxu0 0.0
    %558 = vmatprep.subr.mxu0 0.0
    %559 = vmatpush2.msra.mxu0 0.0
    %560 = vmatprep.subr.mxu0 0.0
    %561 = vmatpush2.msra.mxu0 0.0
    %562 = vmatprep.subr.mxu0 0.0
    %563 = vmatpush2.msra.mxu0 0.0
    %564 = vmatprep.subr.mxu0 0.0
    %565 = vmatpush2.msra.mxu0 0.0
    %566 = vmatprep.subr.mxu0 0.0
    %567 = vmatpush2.msra.mxu0 0.0
    %568 = vmatprep.subr.mxu0 0.0
    %569 = vmatpush2.msra.mxu0 0.0
    %570 = vmatprep.subr.mxu0 0.0
    %571 = vmatpush2.msra.mxu0 0.0
    %572 = vmatprep.subr.mxu0 0.0
    %573 = vmatpush2.msra.mxu0 0.0
    %574 = vmatprep.subr.mxu0 0.0
    %575 = vmatpush2.msra.mxu0 0.0
    %576 = vmatprep.subr.mxu0 0.0
    %577 = vmatpush2.msra.mxu0 0.0
    %578 = vmatprep.mubr.f32.mxu0 0.0
    %v579 = vand.u32 %v508, 4294901760
    %v580 = vsub.f32 %v508, %v579
    %v581 = vand.u32 %v580, 4294901760
    %v582 = vsub.f32 %v580, %v581
    %v583 = vand.u32 %v582, 4294901760
    %584 = vmatmul.mubr.f32.gmra.mxu0 %v583
    %v585 = vpop.f32.mrf.mxu0
    %v586 = vadd.f32 0.0, %v585
    %v587 = vpop.f32.mrf.mxu0
    %588 = vdwg.mxu0
    %589 = vmatprep.subr.mxu0 0.0
    %590 = vmatpush1.msra.mxu0 0.0
    %591 = vmatprep.subr.mxu0 0.0
    %592 = vmatpush1.msra.mxu0 0.0
    %593 = vmatprep.subr.mxu0 0.0
    %594 = vmatpush1.msra.mxu0 0.0
    %595 = vmatprep.subr.mxu0 0.0
    %596 = vmatpush1.msra.mxu0 0.0
    %597 = vmatprep.subr.mxu0 0.0
    %598 = vmatpush1.msra.mxu0 0.0
    %599 = vmatprep.subr.mxu0 0.0
    %600 = vmatpush1.msra.mxu0 0.0
    %601 = vmatprep.subr.mxu0 0.0
    %602 = vmatpush1.msra.mxu0 0.0
    %603 = vmatprep.subr.mxu0 0.0
    %604 = vmatpush1.msra.mxu0 0.0
    %605 = vmatprep.subr.mxu0 0.0
    %606 = vmatpush1.msra.mxu0 0.0
    %607 = vmatprep.subr.mxu0 0.0
    %608 = vmatpush1.msra.mxu0 0.0
    %609 = vmatprep.subr.mxu0 0.0
    %610 = vmatpush1.msra.mxu0 0.0
    %611 = vmatprep.subr.mxu0 0.0
    %612 = vmatpush1.msra.mxu0 0.0
    %613 = vmatprep.subr.mxu0 0.0
    %v614 = vand.u32 %v505, 4294901760
    %v615 = vsub.f32 %v505, %v614
    %v616 = vand.u32 %v615, 4294901760
    %v617 = vsub.f32 %v615, %v616
    %v618 = vand.u32 %v617, 4294901760
    %619 = vmatpush1.msra.mxu0 %v618
    %620 = vmatprep.subr.mxu0 0.0
    %v621 = vand.u32 %v504, 4294901760
    %v622 = vsub.f32 %v504, %v621
    %v623 = vand.u32 %v622, 4294901760
    %v624 = vsub.f32 %v622, %v623
    %v625 = vand.u32 %v624, 4294901760
    %626 = vmatpush1.msra.mxu0 %v625
    %627 = vmatprep.subr.mxu0 0.0
    %v628 = vand.u32 %v503, 4294901760
    %v629 = vsub.f32 %v503, %v628
    %v630 = vand.u32 %v629, 4294901760
    %v631 = vsub.f32 %v629, %v630
    %v632 = vand.u32 %v631, 4294901760
    %633 = vmatpush1.msra.mxu0 %v632
    %634 = vmatprep.subr.mxu0 0.0
    %v635 = vand.u32 %v502, 4294901760
    %v636 = vsub.f32 %v502, %v635
    %v637 = vand.u32 %v636, 4294901760
    %v638 = vsub.f32 %v636, %v637
    %v639 = vand.u32 %v638, 4294901760
    %640 = vmatpush1.msra.mxu0 %v639
    %641 = vmatprep.subr.mxu0 0.0
    %642 = vmatpush2.msra.mxu0 0.0
    %643 = vmatprep.subr.mxu0 0.0
    %644 = vmatpush2.msra.mxu0 0.0
    %645 = vmatprep.subr.mxu0 0.0
    %646 = vmatpush2.msra.mxu0 0.0
    %647 = vmatprep.subr.mxu0 0.0
    %648 = vmatpush2.msra.mxu0 0.0
    %649 = vmatprep.subr.mxu0 0.0
    %650 = vmatpush2.msra.mxu0 0.0
    %651 = vmatprep.subr.mxu0 0.0
    %652 = vmatpush2.msra.mxu0 0.0
    %653 = vmatprep.subr.mxu0 0.0
    %654 = vmatpush2.msra.mxu0 0.0
    %655 = vmatprep.subr.mxu0 0.0
    %656 = vmatpush2.msra.mxu0 0.0
    %657 = vmatprep.subr.mxu0 0.0
    %658 = vmatpush2.msra.mxu0 0.0
    %659 = vmatprep.subr.mxu0 0.0
    %660 = vmatpush2.msra.mxu0 0.0
    %661 = vmatprep.subr.mxu0 0.0
    %662 = vmatpush2.msra.mxu0 0.0
    %663 = vmatprep.subr.mxu0 0.0
    %664 = vmatpush2.msra.mxu0 0.0
    %665 = vmatprep.subr.mxu0 0.0
    %666 = vmatpush2.msra.mxu0 0.0
    %667 = vmatprep.subr.mxu0 0.0
    %668 = vmatpush2.msra.mxu0 0.0
    %669 = vmatprep.subr.mxu0 0.0
    %670 = vmatpush2.msra.mxu0 0.0
    %671 = vmatprep.subr.mxu0 0.0
    %672 = vmatpush2.msra.mxu0 0.0
    %673 = vmatprep.mubr.f32.mxu0 0.0
    %v674 = vand.u32 %v508, 4294901760
    %675 = vmatmul.mubr.f32.gmra.mxu0 %v674
    %v676 = vpop.f32.mrf.mxu0
    %v677 = vadd.f32 %v586, %v676
    %v678 = vpop.f32.mrf.mxu0
    %679 = vdwg.mxu0
    %680 = vmatprep.subr.mxu0 0.0
    %681 = vmatpush1.msra.mxu0 0.0
    %682 = vmatprep.subr.mxu0 0.0
    %683 = vmatpush1.msra.mxu0 0.0
    %684 = vmatprep.subr.mxu0 0.0
    %685 = vmatpush1.msra.mxu0 0.0
    %686 = vmatprep.subr.mxu0 0.0
    %687 = vmatpush1.msra.mxu0 0.0
    %688 = vmatprep.subr.mxu0 0.0
    %689 = vmatpush1.msra.mxu0 0.0
    %690 = vmatprep.subr.mxu0 0.0
    %691 = vmatpush1.msra.mxu0 0.0
    %692 = vmatprep.subr.mxu0 0.0
    %693 = vmatpush1.msra.mxu0 0.0
    %694 = vmatprep.subr.mxu0 0.0
    %695 = vmatpush1.msra.mxu0 0.0
    %696 = vmatprep.subr.mxu0 0.0
    %697 = vmatpush1.msra.mxu0 0.0
    %698 = vmatprep.subr.mxu0 0.0
    %699 = vmatpush1.msra.mxu0 0.0
    %700 = vmatprep.subr.mxu0 0.0
    %701 = vmatpush1.msra.mxu0 0.0
    %702 = vmatprep.subr.mxu0 0.0
    %703 = vmatpush1.msra.mxu0 0.0
    %704 = vmatprep.subr.mxu0 0.0
    %v705 = vand.u32 %v505, 4294901760
    %v706 = vsub.f32 %v505, %v705
    %707 = vmatpush1.msra.mxu0 %v706
    %708 = vmatprep.subr.mxu0 0.0
    %v709 = vand.u32 %v504, 4294901760
    %v710 = vsub.f32 %v504, %v709
    %711 = vmatpush1.msra.mxu0 %v710
    %712 = vmatprep.subr.mxu0 0.0
    %v713 = vand.u32 %v503, 4294901760
    %v714 = vsub.f32 %v503, %v713
    %715 = vmatpush1.msra.mxu0 %v714
    %716 = vmatprep.subr.mxu0 0.0
    %v717 = vand.u32 %v502, 4294901760
    %v718 = vsub.f32 %v502, %v717
    %719 = vmatpush1.msra.mxu0 %v718
    %720 = vmatprep.subr.mxu0 0.0
    %721 = vmatpush2.msra.mxu0 0.0
    %722 = vmatprep.subr.mxu0 0.0
    %723 = vmatpush2.msra.mxu0 0.0
    %724 = vmatprep.subr.mxu0 0.0
    %725 = vmatpush2.msra.mxu0 0.0
    %726 = vmatprep.subr.mxu0 0.0
    %727 = vmatpush2.msra.mxu0 0.0
    %728 = vmatprep.subr.mxu0 0.0
    %729 = vmatpush2.msra.mxu0 0.0
    %730 = vmatprep.subr.mxu0 0.0
    %731 = vmatpush2.msra.mxu0 0.0
    %732 = vmatprep.subr.mxu0 0.0
    %733 = vmatpush2.msra.mxu0 0.0
    %734 = vmatprep.subr.mxu0 0.0
    %735 = vmatpush2.msra.mxu0 0.0
    %736 = vmatprep.subr.mxu0 0.0
    %737 = vmatpush2.msra.mxu0 0.0
    %738 = vmatprep.subr.mxu0 0.0
    %739 = vmatpush2.msra.mxu0 0.0
    %740 = vmatprep.subr.mxu0 0.0
    %741 = vmatpush2.msra.mxu0 0.0
    %742 = vmatprep.subr.mxu0 0.0
    %743 = vmatpush2.msra.mxu0 0.0
    %744 = vmatprep.subr.mxu0 0.0
    %745 = vmatpush2.msra.mxu0 0.0
    %746 = vmatprep.subr.mxu0 0.0
    %747 = vmatpush2.msra.mxu0 0.0
    %748 = vmatprep.subr.mxu0 0.0
    %749 = vmatpush2.msra.mxu0 0.0
    %750 = vmatprep.subr.mxu0 0.0
    %751 = vmatpush2.msra.mxu0 0.0
    %752 = vmatprep.mubr.f32.mxu0 0.0
    %v753 = vand.u32 %v508, 4294901760
    %v754 = vsub.f32 %v508, %v753
    %755 = vmatmul.mubr.f32.gmra.mxu0 %v754
    %v756 = vpop.f32.mrf.mxu0
    %v757 = vadd.f32 %v677, %v756
    %v758 = vpop.f32.mrf.mxu0
    %759 = vdwg.mxu0
    %760 = vmatprep.subr.mxu0 0.0
    %761 = vmatpush1.msra.mxu0 0.0
    %762 = vmatprep.subr.mxu0 0.0
    %763 = vmatpush1.msra.mxu0 0.0
    %764 = vmatprep.subr.mxu0 0.0
    %765 = vmatpush1.msra.mxu0 0.0
    %766 = vmatprep.subr.mxu0 0.0
    %767 = vmatpush1.msra.mxu0 0.0
    %768 = vmatprep.subr.mxu0 0.0
    %769 = vmatpush1.msra.mxu0 0.0
    %770 = vmatprep.subr.mxu0 0.0
    %771 = vmatpush1.msra.mxu0 0.0
    %772 = vmatprep.subr.mxu0 0.0
    %773 = vmatpush1.msra.mxu0 0.0
    %774 = vmatprep.subr.mxu0 0.0
    %775 = vmatpush1.msra.mxu0 0.0
    %776 = vmatprep.subr.mxu0 0.0
    %777 = vmatpush1.msra.mxu0 0.0
    %778 = vmatprep.subr.mxu0 0.0
    %779 = vmatpush1.msra.mxu0 0.0
    %780 = vmatprep.subr.mxu0 0.0
    %781 = vmatpush1.msra.mxu0 0.0
    %782 = vmatprep.subr.mxu0 0.0
    %783 = vmatpush1.msra.mxu0 0.0
    %784 = vmatprep.subr.mxu0 0.0
    %v785 = vand.u32 %v505, 4294901760
    %786 = vmatpush1.msra.mxu0 %v785
    %787 = vmatprep.subr.mxu0 0.0
    %v788 = vand.u32 %v504, 4294901760
    %789 = vmatpush1.msra.mxu0 %v788
    %790 = vmatprep.subr.mxu0 0.0
    %v791 = vand.u32 %v503, 4294901760
    %792 = vmatpush1.msra.mxu0 %v791
    %793 = vmatprep.subr.mxu0 0.0
    %v794 = vand.u32 %v502, 4294901760
    %795 = vmatpush1.msra.mxu0 %v794
    %796 = vmatprep.subr.mxu0 0.0
    %797 = vmatpush2.msra.mxu0 0.0
    %798 = vmatprep.subr.mxu0 0.0
    %799 = vmatpush2.msra.mxu0 0.0
    %800 = vmatprep.subr.mxu0 0.0
    %801 = vmatpush2.msra.mxu0 0.0
    %802 = vmatprep.subr.mxu0 0.0
    %803 = vmatpush2.msra.mxu0 0.0
    %804 = vmatprep.subr.mxu0 0.0
    %805 = vmatpush2.msra.mxu0 0.0
    %806 = vmatprep.subr.mxu0 0.0
    %807 = vmatpush2.msra.mxu0 0.0
    %808 = vmatprep.subr.mxu0 0.0
    %809 = vmatpush2.msra.mxu0 0.0
    %810 = vmatprep.subr.mxu0 0.0
    %811 = vmatpush2.msra.mxu0 0.0
    %812 = vmatprep.subr.mxu0 0.0
    %813 = vmatpush2.msra.mxu0 0.0
    %814 = vmatprep.subr.mxu0 0.0
    %815 = vmatpush2.msra.mxu0 0.0
    %816 = vmatprep.subr.mxu0 0.0
    %817 = vmatpush2.msra.mxu0 0.0
    %818 = vmatprep.subr.mxu0 0.0
    %819 = vmatpush2.msra.mxu0 0.0
    %820 = vmatprep.subr.mxu0 0.0
    %821 = vmatpush2.msra.mxu0 0.0
    %822 = vmatprep.subr.mxu0 0.0
    %823 = vmatpush2.msra.mxu0 0.0
    %824 = vmatprep.subr.mxu0 0.0
    %825 = vmatpush2.msra.mxu0 0.0
    %826 = vmatprep.subr.mxu0 0.0
    %827 = vmatpush2.msra.mxu0 0.0
    %828 = vmatprep.mubr.f32.mxu0 0.0
    %v829 = vand.u32 %v508, 4294901760
    %v830 = vsub.f32 %v508, %v829
    %v831 = vand.u32 %v830, 4294901760
    %832 = vmatmul.mubr.f32.gmra.mxu0 %v831
    %v833 = vpop.f32.mrf.mxu0
    %v834 = vadd.f32 %v757, %v833
    %v835 = vpop.f32.mrf.mxu0
    %836 = vdwg.mxu0
    %837 = vmatprep.subr.mxu0 0.0
    %838 = vmatpush1.msra.mxu0 0.0
    %839 = vmatprep.subr.mxu0 0.0
    %840 = vmatpush1.msra.mxu0 0.0
    %841 = vmatprep.subr.mxu0 0.0
    %842 = vmatpush1.msra.mxu0 0.0
    %843 = vmatprep.subr.mxu0 0.0
    %844 = vmatpush1.msra.mxu0 0.0
    %845 = vmatprep.subr.mxu0 0.0
    %846 = vmatpush1.msra.mxu0 0.0
    %847 = vmatprep.subr.mxu0 0.0
    %848 = vmatpush1.msra.mxu0 0.0
    %849 = vmatprep.subr.mxu0 0.0
    %850 = vmatpush1.msra.mxu0 0.0
    %851 = vmatprep.subr.mxu0 0.0
    %852 = vmatpush1.msra.mxu0 0.0
    %853 = vmatprep.subr.mxu0 0.0
    %854 = vmatpush1.msra.mxu0 0.0
    %855 = vmatprep.subr.mxu0 0.0
    %856 = vmatpush1.msra.mxu0 0.0
    %857 = vmatprep.subr.mxu0 0.0
    %858 = vmatpush1.msra.mxu0 0.0
    %859 = vmatprep.subr.mxu0 0.0
    %860 = vmatpush1.msra.mxu0 0.0
    %861 = vmatprep.subr.mxu0 0.0
    %v862 = vand.u32 %v505, 4294901760
    %v863 = vsub.f32 %v505, %v862
    %v864 = vand.u32 %v863, 4294901760
    %865 = vmatpush1.msra.mxu0 %v864
    %866 = vmatprep.subr.mxu0 0.0
    %v867 = vand.u32 %v504, 4294901760
    %v868 = vsub.f32 %v504, %v867
    %v869 = vand.u32 %v868, 4294901760
    %870 = vmatpush1.msra.mxu0 %v869
    %871 = vmatprep.subr.mxu0 0.0
    %v872 = vand.u32 %v503, 4294901760
    %v873 = vsub.f32 %v503, %v872
    %v874 = vand.u32 %v873, 4294901760
    %875 = vmatpush1.msra.mxu0 %v874
    %876 = vmatprep.subr.mxu0 0.0
    %v877 = vand.u32 %v502, 4294901760
    %v878 = vsub.f32 %v502, %v877
    %v879 = vand.u32 %v878, 4294901760
    %880 = vmatpush1.msra.mxu0 %v879
    %881 = vmatprep.subr.mxu0 0.0
    %882 = vmatpush2.msra.mxu0 0.0
    %883 = vmatprep.subr.mxu0 0.0
    %884 = vmatpush2.msra.mxu0 0.0
    %885 = vmatprep.subr.mxu0 0.0
    %886 = vmatpush2.msra.mxu0 0.0
    %887 = vmatprep.subr.mxu0 0.0
    %888 = vmatpush2.msra.mxu0 0.0
    %889 = vmatprep.subr.mxu0 0.0
    %890 = vmatpush2.msra.mxu0 0.0
    %891 = vmatprep.subr.mxu0 0.0
    %892 = vmatpush2.msra.mxu0 0.0
    %893 = vmatprep.subr.mxu0 0.0
    %894 = vmatpush2.msra.mxu0 0.0
    %895 = vmatprep.subr.mxu0 0.0
    %896 = vmatpush2.msra.mxu0 0.0
    %897 = vmatprep.subr.mxu0 0.0
    %898 = vmatpush2.msra.mxu0 0.0
    %899 = vmatprep.subr.mxu0 0.0
    %900 = vmatpush2.msra.mxu0 0.0
    %901 = vmatprep.subr.mxu0 0.0
    %902 = vmatpush2.msra.mxu0 0.0
    %903 = vmatprep.subr.mxu0 0.0
    %904 = vmatpush2.msra.mxu0 0.0
    %905 = vmatprep.subr.mxu0 0.0
    %906 = vmatpush2.msra.mxu0 0.0
    %907 = vmatprep.subr.mxu0 0.0
    %908 = vmatpush2.msra.mxu0 0.0
    %909 = vmatprep.subr.mxu0 0.0
    %910 = vmatpush2.msra.mxu0 0.0
    %911 = vmatprep.subr.mxu0 0.0
    %912 = vmatpush2.msra.mxu0 0.0
    %913 = vmatprep.mubr.f32.mxu0 0.0
    %v914 = vand.u32 %v508, 4294901760
    %915 = vmatmul.mubr.f32.gmra.mxu0 %v914
    %v916 = vpop.f32.mrf.mxu0
    %v917 = vadd.f32 %v834, %v916
    %v918 = vpop.f32.mrf.mxu0
    %919 = vdwg.mxu0
    %920 = vmatprep.subr.mxu0 0.0
    %921 = vmatpush1.msra.mxu0 0.0
    %922 = vmatprep.subr.mxu0 0.0
    %923 = vmatpush1.msra.mxu0 0.0
    %924 = vmatprep.subr.mxu0 0.0
    %925 = vmatpush1.msra.mxu0 0.0
    %926 = vmatprep.subr.mxu0 0.0
    %927 = vmatpush1.msra.mxu0 0.0
    %928 = vmatprep.subr.mxu0 0.0
    %929 = vmatpush1.msra.mxu0 0.0
    %930 = vmatprep.subr.mxu0 0.0
    %931 = vmatpush1.msra.mxu0 0.0
    %932 = vmatprep.subr.mxu0 0.0
    %933 = vmatpush1.msra.mxu0 0.0
    %934 = vmatprep.subr.mxu0 0.0
    %935 = vmatpush1.msra.mxu0 0.0
    %936 = vmatprep.subr.mxu0 0.0
    %937 = vmatpush1.msra.mxu0 0.0
    %938 = vmatprep.subr.mxu0 0.0
    %939 = vmatpush1.msra.mxu0 0.0
    %940 = vmatprep.subr.mxu0 0.0
    %941 = vmatpush1.msra.mxu0 0.0
    %942 = vmatprep.subr.mxu0 0.0
    %943 = vmatpush1.msra.mxu0 0.0
    %944 = vmatprep.subr.mxu0 0.0
    %v945 = vand.u32 %v505, 4294901760
    %946 = vmatpush1.msra.mxu0 %v945
    %947 = vmatprep.subr.mxu0 0.0
    %v948 = vand.u32 %v504, 4294901760
    %949 = vmatpush1.msra.mxu0 %v948
    %950 = vmatprep.subr.mxu0 0.0
    %v951 = vand.u32 %v503, 4294901760
    %952 = vmatpush1.msra.mxu0 %v951
    %953 = vmatprep.subr.mxu0 0.0
    %v954 = vand.u32 %v502, 4294901760
    %955 = vmatpush1.msra.mxu0 %v954
    %956 = vmatprep.subr.mxu0 0.0
    %957 = vmatpush2.msra.mxu0 0.0
    %958 = vmatprep.subr.mxu0 0.0
    %959 = vmatpush2.msra.mxu0 0.0
    %960 = vmatprep.subr.mxu0 0.0
    %961 = vmatpush2.msra.mxu0 0.0
    %962 = vmatprep.subr.mxu0 0.0
    %963 = vmatpush2.msra.mxu0 0.0
    %964 = vmatprep.subr.mxu0 0.0
    %965 = vmatpush2.msra.mxu0 0.0
    %966 = vmatprep.subr.mxu0 0.0
    %967 = vmatpush2.msra.mxu0 0.0
    %968 = vmatprep.subr.mxu0 0.0
    %969 = vmatpush2.msra.mxu0 0.0
    %970 = vmatprep.subr.mxu0 0.0
    %971 = vmatpush2.msra.mxu0 0.0
    %972 = vmatprep.subr.mxu0 0.0
    %973 = vmatpush2.msra.mxu0 0.0
    %974 = vmatprep.subr.mxu0 0.0
    %975 = vmatpush2.msra.mxu0 0.0
    %976 = vmatprep.subr.mxu0 0.0
    %977 = vmatpush2.msra.mxu0 0.0
    %978 = vmatprep.subr.mxu0 0.0
    %979 = vmatpush2.msra.mxu0 0.0
    %980 = vmatprep.subr.mxu0 0.0
    %981 = vmatpush2.msra.mxu0 0.0
    %982 = vmatprep.subr.mxu0 0.0
    %983 = vmatpush2.msra.mxu0 0.0
    %984 = vmatprep.subr.mxu0 0.0
    %985 = vmatpush2.msra.mxu0 0.0
    %986 = vmatprep.subr.mxu0 0.0
    %987 = vmatpush2.msra.mxu0 0.0
    %988 = vmatprep.mubr.f32.mxu0 0.0
    %v989 = vand.u32 %v508, 4294901760
    %990 = vmatmul.mubr.f32.gmra.mxu0 %v989
    %v991 = vpop.f32.mrf.mxu0
    %v992 = vadd.f32 %v917, %v991
    %v993 = vpop.f32.mrf.mxu0
    %994 = vdwg.mxu0
    %v995 = vadd.f32 %v501, %v992
    %vm996 = vcmask 64512
    %997 = vst.msk [vmem:[#allocation2] sm:$0xff] %vm996, %v995
    // Predicated region
    $region26: #{tpu_custom_call.1} parent=1 // pred_check
      %p998 = pneg %p21
    $region27: #{tpu_custom_call.1} parent=1 // pred_check_branch
      %1000 = sbr.rel (%p998) target = $region29
    $region28: #{tpu_custom_call.1} parent=1 // pred_region
      %v1001 = vld [vmem:[#allocation2] sm:$0xff]
      %v1002 = vld [vmem:[%s4] sm:$0x1]
      %v1004 = vlaneseq
      %v1005 = vshrl.u32 %v1004, 7
      %v1006 = vsub.s32 0, %v1005
      %v1007 = vrot.slane %v1002, %v1006
      %v1009 = vadd.f32 %v1001, %v1007
      %1010 = vst.msk [vmem:[#allocation3] sm:$0xff] %vm996, %v1009
    $region29: #{tpu_custom_call.1} parent=1 // pred_fallthru
      _
    // Predicated region
    $region30: #{tpu_custom_call.1} parent=1 // pred_check
      _
    $region31: #{tpu_custom_call.1} parent=1 // pred_check_branch
      %1012 = sbr.rel (0) target = $region33
    $region32: #{tpu_custom_call.1} parent=1 // pred_region
      %s1014 = ssub.s32 128, 128
      %1015 = vsyncadd [#allocation4], %s1014
      %s1017 = sshll.u32 [#allocation3], 4
      %s1018 = int_to_ptr.vmem [resolvable:$true] %s1017
      %1020 = dma.vmem_to_hbm [thread:$0]  %s1018, 128, %s5, [#allocation4]
    $region33: #{tpu_custom_call.1} parent=1 // pred_fallthru
      _
    // Predicated region
    $region34: #{tpu_custom_call.1} parent=1 // pred_check
      _
    $region35: #{tpu_custom_call.1} parent=1 // pred_check_branch
      %1022 = sbr.rel (0) target = $region37
    $region36: #{tpu_custom_call.1} parent=1 // pred_region
      %1023 = dma.done [#allocation4], 128
    $region37: #{tpu_custom_call.1} parent=1 // pred_fallthru
      _
    %1024 = vsyncpa [#allocation4], 1

</llo_original>
